<compile_context>
chip_gen: v7x
topology: tpu7x:2x2x1
jax: 0.10.0
libtpu: 0.0.40
codegen_flags: <defaults>
</compile_context>

<pallas_src>
import functools

import jax
import jax.numpy as jnp
from jax.experimental import pallas as pl
from jax.experimental.pallas import tpu as pltpu


def _gat_tile_kernel(feat_ref, el_ref, er_ref, adj_ref, out_ref, *,
                     num_heads, out_feats, negative_slope):
    """One destination-row tile; all heads unrolled inside."""
    H, F = num_heads, out_feats

    adj = adj_ref[...]                      # (TILE, N) bf16 0/1 mask
    mask = adj > 0
    el = el_ref[...]                        # (H, N)    f32 source scores
    er = er_ref[...]                        # (TILE, H) f32 dst scores
    feat = feat_ref[...]                    # (N, H*F)  bf16 source features

    head_outs = []
    for h in range(H):                      # static unroll over heads
        # e[d, s] = leaky_relu(el[s] + er[d])
        e = er[:, h:h + 1] + el[h:h + 1, :]                 # (TILE, N)
        e = jnp.where(e > 0, e, negative_slope * e)
        # masked edge softmax over incoming edges (src axis)
        e = jnp.where(mask, e, -1e30)
        m = jnp.max(e, axis=1, keepdims=True)               # (TILE, 1)
        p = jnp.exp(e - m)
        p = jnp.where(mask, p, 0.0)
        denom = jnp.sum(p, axis=1, keepdims=True)
        denom = jnp.maximum(denom, 1e-20)                   # 0-in-degree guard
        a = p * pl.reciprocal(denom, approx=True)           # (TILE, N)
        # aggregation: out[d] = sum_s a[d, s] * feat[s]  (bf16 MXU operands)
        out_h = jnp.dot(a.astype(jnp.bfloat16),
                        feat[:, h * F:(h + 1) * F],
                        preferred_element_type=jnp.float32)  # (TILE, F)
        head_outs.append(out_h)

    # single lane-dense store of the whole (TILE, H*F) block in final layout
    out_ref[...] = jnp.concatenate(head_outs, axis=-1).astype(out_ref.dtype)


def gat_conv_forward(x, W, attn_l, attn_r, adj, *, num_heads, out_feats,
                     negative_slope=0.2, tile_dst=512):
    N, D_in = x.shape
    H, F = num_heads, out_feats

    # fc as ONE wide matmul (outside the O(N^2) kernel). f32 for accuracy of
    # the attention logits that feed exp().
    feat = jnp.dot(x, W, preferred_element_type=jnp.float32)        # (N, H*F)
    feat_hf = feat.reshape(N, H, F)
    # attention projections (tiny). el is produced pre-transposed (H, N) so the
    # kernel broadcasts it along lanes with no in-kernel transpose.
    el_t = jnp.einsum("nhf,hf->hn", feat_hf, attn_l.reshape(H, F))  # (H, N)
    er = jnp.einsum("nhf,hf->nh", feat_hf, attn_r.reshape(H, F))    # (N, H)

    feat_bf16 = feat.astype(jnp.bfloat16)   # aggregation MXU operand
    adj_bf16 = adj.astype(jnp.bfloat16)     # 0/1 is exact; halves adj DMA/VMEM

    # destination-row tile size (must divide N; fall back to full N otherwise)
    tile = min(tile_dst, N)
    while tile > 8 and N % tile != 0:
        tile //= 2
    if N % tile != 0:
        tile = N
    grid = (N // tile,)

    out_flat = pl.pallas_call(
        functools.partial(_gat_tile_kernel, num_heads=H, out_feats=F,
                          negative_slope=negative_slope),
        out_shape=jax.ShapeDtypeStruct((N, H * F), jnp.float32),
        grid=grid,
        in_specs=[
            pl.BlockSpec((N, H * F), lambda t: (0, 0)),   # feat (all src nodes)
            pl.BlockSpec((H, N), lambda t: (0, 0)),       # el^T (all src nodes)
            pl.BlockSpec((tile, H), lambda t: (t, 0)),    # er for this dst tile
            pl.BlockSpec((tile, N), lambda t: (t, 0)),    # adj dst-row panel
        ],
        out_specs=pl.BlockSpec((tile, H * F), lambda t: (t, 0)),
        compiler_params=pltpu.CompilerParams(
            dimension_semantics=("parallel",)),
    )(feat_bf16, el_t, er, adj_bf16)

    # (N, H*F) head-major is exactly (N, H, F): free reshape, no transpose.
    return out_flat.reshape(N, H, F)


def gat_conv_reference(x, W, attn_l, attn_r, adj, *, num_heads, out_feats,
                       negative_slope=0.2):
    H, F = num_heads, out_feats
    feat = (x @ W).reshape(-1, H, F)                     # (N, H, F)
    el = (feat * attn_l.reshape(1, H, F)).sum(-1)        # (N, H)
    er = (feat * attn_r.reshape(1, H, F)).sum(-1)        # (N, H)
    e = er[:, None, :] + el[None, :, :]                  # (N_dst, N_src, H)
    e = jnp.where(e > 0, e, negative_slope * e)
    mask = (adj > 0)[:, :, None]
    e = jnp.where(mask, e, -1e30)
    a = jax.nn.softmax(e, axis=1)
    a = jnp.where(mask, a, 0.0)
    return jnp.einsum("vuh,uhf->vhf", a, feat)           # (N, H, F)


if __name__ == "__main__":
    # Small synthetic graph / params (deterministic).
    N = 16           # number of nodes
    in_feats = 16
    out_feats = 8
    num_heads = 4
    negative_slope = 0.2
    gain = jnp.sqrt(2.0)  # calculate_gain('relu')

    key = jax.random.PRNGKey(0)
    k_x, k_w, k_al, k_ar, k_adj = jax.random.split(key, 5)

    x = jax.random.normal(k_x, (N, in_feats), dtype=jnp.float32)

    # xavier_normal_-style deterministic init for fc weight (D_in, H*F).
    fan_in, fan_out = in_feats, num_heads * out_feats
    std_w = gain * jnp.sqrt(2.0 / (fan_in + fan_out))
    W = std_w * jax.random.normal(k_w, (in_feats, num_heads * out_feats),
                                  dtype=jnp.float32)

    std_a = gain * jnp.sqrt(2.0 / (out_feats + num_heads * out_feats))
    attn_l = std_a * jax.random.normal(k_al, (num_heads, out_feats),
                                       dtype=jnp.float32)
    attn_r = std_a * jax.random.normal(k_ar, (num_heads, out_feats),
                                       dtype=jnp.float32)

    # Random directed adjacency with self-loops (guarantees in_degree > 0,
    # mirroring allow_zero_in_degree handling via dgl.add_self_loop).
    adj = (jax.random.uniform(k_adj, (N, N)) < 0.3).astype(jnp.float32)
    adj = jnp.maximum(adj, jnp.eye(N, dtype=jnp.float32))

    out = gat_conv_forward(x, W, attn_l, attn_r, adj,
                           num_heads=num_heads, out_feats=out_feats,
                           negative_slope=negative_slope)
    out = jax.block_until_ready(out)

    ref = gat_conv_reference(x, W, attn_l, attn_r, adj,
                             num_heads=num_heads, out_feats=out_feats,
                             negative_slope=negative_slope)
    assert out.shape == (N, num_heads, out_feats)
    # Tolerance loosened slightly: bf16 aggregation operands + approx recip.
    max_err = float(jnp.max(jnp.abs(out - ref)))
    assert jnp.allclose(out, ref, atol=5e-2, rtol=5e-2), max_err

    # TODO(synk): feat_drop / attn_drop (p=0 here) would need pltpu PRNG if nonzero.
    print("KERNEL_OK")
</pallas_src>

<mosaic_0001>
module attributes {stable_mosaic.version = 11 : i64} {
  func.func @_gat_tile_kernel(%arg0: i32, %arg1: memref<16x32xbf16, #tpu.memory_space<vmem>>, %arg2: memref<4x16xf32, #tpu.memory_space<vmem>>, %arg3: memref<16x4xf32, #tpu.memory_space<vmem>>, %arg4: memref<16x16xbf16, #tpu.memory_space<vmem>>, %arg5: memref<16x32xf32, #tpu.memory_space<vmem>>) attributes {dimension_semantics = [#tpu.dimension_semantics<parallel>], iteration_bounds = array<i64: 1>, scalar_prefetch = 0 : i64, scratch_operands = 0 : i64, tpu.core_type = #tpu.core_type<tc>, window_params = [{pipeline_mode = #tpu.pipeline_mode<synchronous>, transform_indices = @transform_0, window_bounds = array<i64: 16, 32>}, {pipeline_mode = #tpu.pipeline_mode<synchronous>, transform_indices = @transform_1, window_bounds = array<i64: 4, 16>}, {transform_indices = @transform_2, window_bounds = array<i64: 16, 4>}, {transform_indices = @transform_3, window_bounds = array<i64: 16, 16>}, {transform_indices = @transform_4, window_bounds = array<i64: 16, 32>}]} {
    %c0 = arith.constant 0 : index
    %c0_0 = arith.constant 0 : index
    %0 = vector.load %arg4[%c0, %c0_0] : memref<16x16xbf16, #tpu.memory_space<vmem>>, vector<16x16xbf16>
    %cst = arith.constant 0.000000e+00 : bf16
    %1 = vector.broadcast %cst : bf16 to vector<16x16xbf16>
    %2 = arith.cmpf ogt, %0, %1 : vector<16x16xbf16>
    %c0_1 = arith.constant 0 : index
    %c0_2 = arith.constant 0 : index
    %3 = vector.load %arg2[%c0_1, %c0_2] : memref<4x16xf32, #tpu.memory_space<vmem>>, vector<4x16xf32>
    %c0_3 = arith.constant 0 : index
    %c0_4 = arith.constant 0 : index
    %4 = vector.load %arg3[%c0_3, %c0_4] : memref<16x4xf32, #tpu.memory_space<vmem>>, vector<16x4xf32>
    %c0_5 = arith.constant 0 : index
    %c0_6 = arith.constant 0 : index
    %5 = vector.load %arg1[%c0_5, %c0_6] : memref<16x32xbf16, #tpu.memory_space<vmem>>, vector<16x32xbf16>
    %6 = vector.extract_strided_slice %4 {offsets = [0, 0], sizes = [16, 1], strides = [1, 1]} : vector<16x4xf32> to vector<16x1xf32>
    %7 = vector.extract_strided_slice %3 {offsets = [0, 0], sizes = [1, 16], strides = [1, 1]} : vector<4x16xf32> to vector<1x16xf32>
    %8 = vector.broadcast %6 : vector<16x1xf32> to vector<16x16xf32>
    %9 = vector.broadcast %7 : vector<1x16xf32> to vector<16x16xf32>
    %10 = arith.addf %8, %9 : vector<16x16xf32>
    %cst_7 = arith.constant 0.000000e+00 : f32
    %11 = vector.broadcast %cst_7 : f32 to vector<16x16xf32>
    %12 = arith.cmpf ogt, %10, %11 : vector<16x16xf32>
    %cst_8 = arith.constant 2.000000e-01 : f32
    %13 = vector.broadcast %cst_8 : f32 to vector<16x16xf32>
    %14 = arith.mulf %13, %10 : vector<16x16xf32>
    %15 = arith.select %12, %10, %14 : vector<16x16xi1>, vector<16x16xf32>
    %cst_9 = arith.constant -1.000000e+30 : f32
    %16 = vector.broadcast %cst_9 : f32 to vector<16x16xf32>
    %17 = arith.select %2, %15, %16 : vector<16x16xi1>, vector<16x16xf32>
    %cst_10 = arith.constant dense<0xFF800000> : vector<16xf32>
    %18 = vector.multi_reduction <maximumf>, %17, %cst_10 [1] : vector<16x16xf32> to vector<16xf32>
    %19 = vector.shape_cast %18 : vector<16xf32> to vector<16x1xf32>
    %20 = vector.broadcast %19 : vector<16x1xf32> to vector<16x16xf32>
    %21 = arith.subf %17, %20 : vector<16x16xf32>
    %22 = math.exp %21 : vector<16x16xf32>
    %cst_11 = arith.constant 0.000000e+00 : f32
    %23 = vector.broadcast %cst_11 : f32 to vector<16x16xf32>
    %24 = arith.select %2, %22, %23 : vector<16x16xi1>, vector<16x16xf32>
    %cst_12 = arith.constant dense<0.000000e+00> : vector<16xf32>
    %25 = vector.multi_reduction <add>, %24, %cst_12 [1] : vector<16x16xf32> to vector<16xf32>
    %26 = vector.shape_cast %25 : vector<16xf32> to vector<16x1xf32>
    %cst_13 = arith.constant 9.99999968E-21 : f32
    %27 = vector.broadcast %cst_13 : f32 to vector<16x1xf32>
    %28 = arith.maximumf %26, %27 : vector<16x1xf32>
    %29 = tpu.reciprocal %28 {approx = true} : vector<16x1xf32> -> vector<16x1xf32>
    %30 = vector.broadcast %29 : vector<16x1xf32> to vector<16x16xf32>
    %31 = arith.mulf %24, %30 : vector<16x16xf32>
    %32 = arith.truncf %31 : vector<16x16xf32> to vector<16x16xbf16>
    %33 = vector.extract_strided_slice %5 {offsets = [0, 0], sizes = [16, 8], strides = [1, 1]} : vector<16x32xbf16> to vector<16x8xbf16>
    %cst_14 = arith.constant dense<0.000000e+00> : vector<16x8xf32>
    %34 = tpu.matmul %32, %33, %cst_14 {dimension_numbers = #tpu.dot_dimension_numbers<[1], [0], [0], [1], [0, 0, 1, 1], [], []>} : vector<16x16xbf16>, vector<16x8xbf16>, vector<16x8xf32> -> vector<16x8xf32>
    %35 = vector.extract_strided_slice %4 {offsets = [0, 1], sizes = [16, 1], strides = [1, 1]} : vector<16x4xf32> to vector<16x1xf32>
    %36 = vector.extract_strided_slice %3 {offsets = [1, 0], sizes = [1, 16], strides = [1, 1]} : vector<4x16xf32> to vector<1x16xf32>
    %37 = vector.broadcast %35 : vector<16x1xf32> to vector<16x16xf32>
    %38 = vector.broadcast %36 : vector<1x16xf32> to vector<16x16xf32>
    %39 = arith.addf %37, %38 : vector<16x16xf32>
    %cst_15 = arith.constant 0.000000e+00 : f32
    %40 = vector.broadcast %cst_15 : f32 to vector<16x16xf32>
    %41 = arith.cmpf ogt, %39, %40 : vector<16x16xf32>
    %cst_16 = arith.constant 2.000000e-01 : f32
    %42 = vector.broadcast %cst_16 : f32 to vector<16x16xf32>
    %43 = arith.mulf %42, %39 : vector<16x16xf32>
    %44 = arith.select %41, %39, %43 : vector<16x16xi1>, vector<16x16xf32>
    %cst_17 = arith.constant -1.000000e+30 : f32
    %45 = vector.broadcast %cst_17 : f32 to vector<16x16xf32>
    %46 = arith.select %2, %44, %45 : vector<16x16xi1>, vector<16x16xf32>
    %cst_18 = arith.constant dense<0xFF800000> : vector<16xf32>
    %47 = vector.multi_reduction <maximumf>, %46, %cst_18 [1] : vector<16x16xf32> to vector<16xf32>
    %48 = vector.shape_cast %47 : vector<16xf32> to vector<16x1xf32>
    %49 = vector.broadcast %48 : vector<16x1xf32> to vector<16x16xf32>
    %50 = arith.subf %46, %49 : vector<16x16xf32>
    %51 = math.exp %50 : vector<16x16xf32>
    %cst_19 = arith.constant 0.000000e+00 : f32
    %52 = vector.broadcast %cst_19 : f32 to vector<16x16xf32>
    %53 = arith.select %2, %51, %52 : vector<16x16xi1>, vector<16x16xf32>
    %cst_20 = arith.constant dense<0.000000e+00> : vector<16xf32>
    %54 = vector.multi_reduction <add>, %53, %cst_20 [1] : vector<16x16xf32> to vector<16xf32>
    %55 = vector.shape_cast %54 : vector<16xf32> to vector<16x1xf32>
    %cst_21 = arith.constant 9.99999968E-21 : f32
    %56 = vector.broadcast %cst_21 : f32 to vector<16x1xf32>
    %57 = arith.maximumf %55, %56 : vector<16x1xf32>
    %58 = tpu.reciprocal %57 {approx = true} : vector<16x1xf32> -> vector<16x1xf32>
    %59 = vector.broadcast %58 : vector<16x1xf32> to vector<16x16xf32>
    %60 = arith.mulf %53, %59 : vector<16x16xf32>
    %61 = arith.truncf %60 : vector<16x16xf32> to vector<16x16xbf16>
    %62 = vector.extract_strided_slice %5 {offsets = [0, 8], sizes = [16, 8], strides = [1, 1]} : vector<16x32xbf16> to vector<16x8xbf16>
    %cst_22 = arith.constant dense<0.000000e+00> : vector<16x8xf32>
    %63 = tpu.matmul %61, %62, %cst_22 {dimension_numbers = #tpu.dot_dimension_numbers<[1], [0], [0], [1], [0, 0, 1, 1], [], []>} : vector<16x16xbf16>, vector<16x8xbf16>, vector<16x8xf32> -> vector<16x8xf32>
    %64 = vector.extract_strided_slice %4 {offsets = [0, 2], sizes = [16, 1], strides = [1, 1]} : vector<16x4xf32> to vector<16x1xf32>
    %65 = vector.extract_strided_slice %3 {offsets = [2, 0], sizes = [1, 16], strides = [1, 1]} : vector<4x16xf32> to vector<1x16xf32>
    %66 = vector.broadcast %64 : vector<16x1xf32> to vector<16x16xf32>
    %67 = vector.broadcast %65 : vector<1x16xf32> to vector<16x16xf32>
    %68 = arith.addf %66, %67 : vector<16x16xf32>
    %cst_23 = arith.constant 0.000000e+00 : f32
    %69 = vector.broadcast %cst_23 : f32 to vector<16x16xf32>
    %70 = arith.cmpf ogt, %68, %69 : vector<16x16xf32>
    %cst_24 = arith.constant 2.000000e-01 : f32
    %71 = vector.broadcast %cst_24 : f32 to vector<16x16xf32>
    %72 = arith.mulf %71, %68 : vector<16x16xf32>
    %73 = arith.select %70, %68, %72 : vector<16x16xi1>, vector<16x16xf32>
    %cst_25 = arith.constant -1.000000e+30 : f32
    %74 = vector.broadcast %cst_25 : f32 to vector<16x16xf32>
    %75 = arith.select %2, %73, %74 : vector<16x16xi1>, vector<16x16xf32>
    %cst_26 = arith.constant dense<0xFF800000> : vector<16xf32>
    %76 = vector.multi_reduction <maximumf>, %75, %cst_26 [1] : vector<16x16xf32> to vector<16xf32>
    %77 = vector.shape_cast %76 : vector<16xf32> to vector<16x1xf32>
    %78 = vector.broadcast %77 : vector<16x1xf32> to vector<16x16xf32>
    %79 = arith.subf %75, %78 : vector<16x16xf32>
    %80 = math.exp %79 : vector<16x16xf32>
    %cst_27 = arith.constant 0.000000e+00 : f32
    %81 = vector.broadcast %cst_27 : f32 to vector<16x16xf32>
    %82 = arith.select %2, %80, %81 : vector<16x16xi1>, vector<16x16xf32>
    %cst_28 = arith.constant dense<0.000000e+00> : vector<16xf32>
    %83 = vector.multi_reduction <add>, %82, %cst_28 [1] : vector<16x16xf32> to vector<16xf32>
    %84 = vector.shape_cast %83 : vector<16xf32> to vector<16x1xf32>
    %cst_29 = arith.constant 9.99999968E-21 : f32
    %85 = vector.broadcast %cst_29 : f32 to vector<16x1xf32>
    %86 = arith.maximumf %84, %85 : vector<16x1xf32>
    %87 = tpu.reciprocal %86 {approx = true} : vector<16x1xf32> -> vector<16x1xf32>
    %88 = vector.broadcast %87 : vector<16x1xf32> to vector<16x16xf32>
    %89 = arith.mulf %82, %88 : vector<16x16xf32>
    %90 = arith.truncf %89 : vector<16x16xf32> to vector<16x16xbf16>
    %91 = vector.extract_strided_slice %5 {offsets = [0, 16], sizes = [16, 8], strides = [1, 1]} : vector<16x32xbf16> to vector<16x8xbf16>
    %cst_30 = arith.constant dense<0.000000e+00> : vector<16x8xf32>
    %92 = tpu.matmul %90, %91, %cst_30 {dimension_numbers = #tpu.dot_dimension_numbers<[1], [0], [0], [1], [0, 0, 1, 1], [], []>} : vector<16x16xbf16>, vector<16x8xbf16>, vector<16x8xf32> -> vector<16x8xf32>
    %93 = vector.extract_strided_slice %4 {offsets = [0, 3], sizes = [16, 1], strides = [1, 1]} : vector<16x4xf32> to vector<16x1xf32>
    %94 = vector.extract_strided_slice %3 {offsets = [3, 0], sizes = [1, 16], strides = [1, 1]} : vector<4x16xf32> to vector<1x16xf32>
    %95 = vector.broadcast %93 : vector<16x1xf32> to vector<16x16xf32>
    %96 = vector.broadcast %94 : vector<1x16xf32> to vector<16x16xf32>
    %97 = arith.addf %95, %96 : vector<16x16xf32>
    %cst_31 = arith.constant 0.000000e+00 : f32
    %98 = vector.broadcast %cst_31 : f32 to vector<16x16xf32>
    %99 = arith.cmpf ogt, %97, %98 : vector<16x16xf32>
    %cst_32 = arith.constant 2.000000e-01 : f32
    %100 = vector.broadcast %cst_32 : f32 to vector<16x16xf32>
    %101 = arith.mulf %100, %97 : vector<16x16xf32>
    %102 = arith.select %99, %97, %101 : vector<16x16xi1>, vector<16x16xf32>
    %cst_33 = arith.constant -1.000000e+30 : f32
    %103 = vector.broadcast %cst_33 : f32 to vector<16x16xf32>
    %104 = arith.select %2, %102, %103 : vector<16x16xi1>, vector<16x16xf32>
    %cst_34 = arith.constant dense<0xFF800000> : vector<16xf32>
    %105 = vector.multi_reduction <maximumf>, %104, %cst_34 [1] : vector<16x16xf32> to vector<16xf32>
    %106 = vector.shape_cast %105 : vector<16xf32> to vector<16x1xf32>
    %107 = vector.broadcast %106 : vector<16x1xf32> to vector<16x16xf32>
    %108 = arith.subf %104, %107 : vector<16x16xf32>
    %109 = math.exp %108 : vector<16x16xf32>
    %cst_35 = arith.constant 0.000000e+00 : f32
    %110 = vector.broadcast %cst_35 : f32 to vector<16x16xf32>
    %111 = arith.select %2, %109, %110 : vector<16x16xi1>, vector<16x16xf32>
    %cst_36 = arith.constant dense<0.000000e+00> : vector<16xf32>
    %112 = vector.multi_reduction <add>, %111, %cst_36 [1] : vector<16x16xf32> to vector<16xf32>
    %113 = vector.shape_cast %112 : vector<16xf32> to vector<16x1xf32>
    %cst_37 = arith.constant 9.99999968E-21 : f32
    %114 = vector.broadcast %cst_37 : f32 to vector<16x1xf32>
    %115 = arith.maximumf %113, %114 : vector<16x1xf32>
    %116 = tpu.reciprocal %115 {approx = true} : vector<16x1xf32> -> vector<16x1xf32>
    %117 = vector.broadcast %116 : vector<16x1xf32> to vector<16x16xf32>
    %118 = arith.mulf %111, %117 : vector<16x16xf32>
    %119 = arith.truncf %118 : vector<16x16xf32> to vector<16x16xbf16>
    %120 = vector.extract_strided_slice %5 {offsets = [0, 24], sizes = [16, 8], strides = [1, 1]} : vector<16x32xbf16> to vector<16x8xbf16>
    %cst_38 = arith.constant dense<0.000000e+00> : vector<16x8xf32>
    %121 = tpu.matmul %119, %120, %cst_38 {dimension_numbers = #tpu.dot_dimension_numbers<[1], [0], [0], [1], [0, 0, 1, 1], [], []>} : vector<16x16xbf16>, vector<16x8xbf16>, vector<16x8xf32> -> vector<16x8xf32>
    %122 = tpu.concatenate %34, %63, %92, %121 in 1 : vector<16x8xf32>, vector<16x8xf32>, vector<16x8xf32>, vector<16x8xf32> -> vector<16x32xf32>
    %c0_39 = arith.constant 0 : index
    %c0_40 = arith.constant 0 : index
    %123 = vector.load %arg5[%c0_39, %c0_40] : memref<16x32xf32, #tpu.memory_space<vmem>>, vector<16x32xf32>
    tpu.vector_store %arg5[%c0_39, %c0_40], %122 {strides = array<i32>} : memref<16x32xf32, #tpu.memory_space<vmem>>, vector<16x32xf32>,
    return
  }
  func.func @transform_0(%arg0: i32) -> (i32, i32) {
    %c0_i32 = arith.constant 0 : i32
    %c0_i32_0 = arith.constant 0 : i32
    %c0_i32_1 = arith.constant 0 : i32
    return %c0_i32, %c0_i32_0 : i32, i32
  }
  func.func @transform_1(%arg0: i32) -> (i32, i32) {
    %c0_i32 = arith.constant 0 : i32
    %c0_i32_0 = arith.constant 0 : i32
    %c0_i32_1 = arith.constant 0 : i32
    return %c0_i32, %c0_i32_0 : i32, i32
  }
  func.func @transform_2(%arg0: i32) -> (i32, i32) {
    %c0_i32 = arith.constant 0 : i32
    %c0_i32_0 = arith.constant 0 : i32
    return %arg0, %c0_i32 : i32, i32
  }
  func.func @transform_3(%arg0: i32) -> (i32, i32) {
    %c0_i32 = arith.constant 0 : i32
    %c0_i32_0 = arith.constant 0 : i32
    return %arg0, %c0_i32 : i32, i32
  }
  func.func @transform_4(%arg0: i32) -> (i32, i32) {
    %c0_i32 = arith.constant 0 : i32
    %c0_i32_0 = arith.constant 0 : i32
    return %arg0, %c0_i32 : i32, i32
  }
}

</mosaic_0001>

<llo_original>
// kernel: tpu_custom_call.1
$region0: #{tpu_custom_call.1}
  #allocation0 [shape = 'u32[]', space=smem, size = 0x4, offset = 0x4, fixed_abs, tag = 'smem constant byte address 0x4 - core index']
  #allocation1 [shape = 'u32[144,128]{1,0:T(1,128)}', space=vmem, size = 0x12000, scoped, tag = 'internal scratch']
  %s0 = inlined_call_operand.vmem [shape: bf16[16,32], index: 0, kind: input, shape index: {}]
  %s1 = inlined_call_operand.vmem [shape: f32[4,16], index: 1, kind: input, shape index: {}]
  %s2 = inlined_call_operand.vmem [shape: f32[16,4], index: 2, kind: input, shape index: {}]
  %s3 = inlined_call_operand.vmem [shape: bf16[16,16], index: 3, kind: input, shape index: {}]
  %s4 = inlined_call_operand.hbm [shape: f32[16,32], index: 4, kind: output, shape index: {}]
  %s5 = sld [smem:[#allocation0]]
  $region26: #{tpu_custom_call.1} parent=0
    _
  %s7 = ssub.s32 1, %s5
  %s8 = scalar_select 0, %s7, %s5
  $region1: #{tpu_custom_call.1} parent=0
    #allocation2 [shape = 'u8[8192]{0}', space=vmem, size = 0x2000, scoped, tag = 'output window, operand 0, single buffered']
    #allocation3 [shape = 's32[1]{0}', space=sflag, size = 0x4, scoped, tag = 'scoped memory for tpu_custom_call.1']
    %9 = vsyncpa [#allocation3], 0
    // Predicated region
    $region2: #{tpu_custom_call.1} parent=1 // pred_check
      _
    $region3: #{tpu_custom_call.1} parent=1 // pred_check_branch
      %11 = sbr.rel (0) target = $region5
    $region4: #{tpu_custom_call.1} parent=1 // pred_region
      _
    $region5: #{tpu_custom_call.1} parent=1 // pred_fallthru
      _
    // Predicated region
    $region6: #{tpu_custom_call.1} parent=1 // pred_check
      _
    $region7: #{tpu_custom_call.1} parent=1 // pred_check_branch
      %13 = sbr.rel (0) target = $region9
    $region8: #{tpu_custom_call.1} parent=1 // pred_region
      _
    $region9: #{tpu_custom_call.1} parent=1 // pred_fallthru
      _
    // Predicated region
    $region10: #{tpu_custom_call.1} parent=1 // pred_check
      _
    $region11: #{tpu_custom_call.1} parent=1 // pred_check_branch
      %15 = sbr.rel (0) target = $region13
    $region12: #{tpu_custom_call.1} parent=1 // pred_region
      _
    $region13: #{tpu_custom_call.1} parent=1 // pred_fallthru
      _
    // Predicated region
    $region14: #{tpu_custom_call.1} parent=1 // pred_check
      _
    $region15: #{tpu_custom_call.1} parent=1 // pred_check_branch
      %17 = sbr.rel (0) target = $region17
    $region16: #{tpu_custom_call.1} parent=1 // pred_region
      _
    $region17: #{tpu_custom_call.1} parent=1 // pred_fallthru
      _
    %v21 = vld [vmem:[%s3] sm:$0xf]
    %v22 = vld [vmem:[%s3 + $0x4] sm:$0xf]
    %vm23 = vcmp.gt.bf16.partialorder %v21, 0
    %vm24 = vcmp.gt.bf16.partialorder %v22, 0
    %v25 = vld [vmem:[%s1] sm:$0xf]
    %v26 = vld [vmem:[%s2] sm:$0xff]
    %v27 = vld [vmem:[%s2 + $0x8] sm:$0xff]
    %v28 = vld [vmem:[%s0] sm:$0xf]
    %v29 = vld [vmem:[%s0 + $0x4] sm:$0xf]
    %31 = vset.pattern.permute.xlu0 0
    %32 = vperm.xlu0 %31, %v26
    %v33 = vpop.permute.xlu0 %32
    %36 = vset.pattern.permute.xlu0 0
    %37 = vperm.xlu0 %36, %v27
    %v38 = vpop.permute.xlu0 %37
    %v40 = vlaneseq
    %v41 = vshrl.u32 %v40, 7
    %v42 = vsub.s32 0, %v41
    %v43 = vrot.slane %v25, %v42
    %v44 = vadd.f32 %v33, %v43
    %v45 = vadd.f32 %v38, %v43
    %vm46 = vcmp.gt.f32.partialorder %v44, 0.0
    %vm47 = vcmp.gt.f32.partialorder %v45, 0.0
    %v48 = vmul.f32 %v44, 0.2
    %v49 = vmul.f32 %v45, 0.2
    %v50 = vsel %vm46, %v44, %v48
    %v51 = vsel %vm47, %v45, %v49
    %v52 = vsel %vm23, 65537, 0
    %v53 = vsel %vm24, 65537, 0
    %v54 = vunpack.c.l.b16 %v52
    %v55 = vunpack.c.l.b16 %v53
    %vm56 = vcmp.ne.s32.totalorder %v54, 0
    %vm57 = vcmp.ne.s32.totalorder %v55, 0
    %v58 = vsel %vm56, %v50, -1e+30
    %v59 = vsel %vm57, %v51, -1e+30
    %vm60 = vcmask 130048
    %v61 = vsel %vm60, %v58, -inf
    %62 = vmax.xlane.f32.xlu0 %v61
    %v63 = vpop.xlane.xlu0 %62
    %v64 = vsel %vm60, %v59, -inf
    %65 = vmax.xlane.f32.xlu0 %v64
    %v66 = vpop.xlane.xlu0 %65
    %v67 = vsub.f32 %v58, %v63
    %v68 = vsub.f32 %v59, %v66
    %v69 = vmul.f32 %v67, 1.442695
    %v70 = vpow.pop %v69
    %v71 = vmul.f32 %v68, 1.442695
    %v72 = vpow.pop %v71
    %v73 = vsel %vm56, %v70, 0.0
    %v74 = vsel %vm57, %v72, 0.0
    %v75 = vsel %vm60, %v73, 0.0
    %76 = vadd.xlane.f32.xlu0 %v75
    %v77 = vpop.xlane.xlu0 %76
    %v78 = vsel %vm60, %v74, 0.0
    %79 = vadd.xlane.f32.xlu0 %v78
    %v80 = vpop.xlane.xlu0 %79
    %v81 = vmax.f32 %v77, 1e-20
    %v82 = vmax.f32 %v80, 1e-20
    %v83 = vrcp.pop %v81
    %v84 = vrcp.pop %v82
    %v85 = vmul.f32 %v73, %v83
    %v86 = vmul.f32 %v74, %v84
    %v87 = vpack.c.bf16 %v86, %v85
    %v90 = vunpack.c.l.b16 %v28
    %v91 = vunpack.c.l.b16 %v29
    %v92 = vpack.c.b16 %v91, %v90
    %v95 = vsel %vm60, %v87, 0
    %97 = vmatprep.subr.bf16.mxu0 0
    %98 = vmatpush1.bf16.msra.mxu0 %v92
    %99 = vmatprep.subr.bf16.mxu0 0
    %100 = vmatpush1.bf16.msra.mxu0 0
    %101 = vmatprep.subr.bf16.mxu0 0
    %102 = vmatpush1.bf16.msra.mxu0 0
    %103 = vmatprep.subr.bf16.mxu0 0
    %104 = vmatpush1.bf16.msra.mxu0 0
    %105 = vmatprep.subr.bf16.mxu0 0
    %106 = vmatpush1.bf16.msra.mxu0 0
    %107 = vmatprep.subr.bf16.mxu0 0
    %108 = vmatpush1.bf16.msra.mxu0 0
    %109 = vmatprep.subr.bf16.mxu0 0
    %110 = vmatpush1.bf16.msra.mxu0 0
    %111 = vmatprep.subr.bf16.mxu0 0
    %112 = vmatpush1.bf16.msra.mxu0 0
    %113 = vmatprep.subr.bf16.mxu0 0
    %114 = vmatpush1.bf16.msra.mxu0 0
    %115 = vmatprep.subr.bf16.mxu0 0
    %116 = vmatpush1.bf16.msra.mxu0 0
    %117 = vmatprep.subr.bf16.mxu0 0
    %118 = vmatpush1.bf16.msra.mxu0 0
    %119 = vmatprep.subr.bf16.mxu0 0
    %120 = vmatpush1.bf16.msra.mxu0 0
    %121 = vmatprep.subr.bf16.mxu0 0
    %122 = vmatpush1.bf16.msra.mxu0 0
    %123 = vmatprep.subr.bf16.mxu0 0
    %124 = vmatpush1.bf16.msra.mxu0 0
    %125 = vmatprep.subr.bf16.mxu0 0
    %126 = vmatpush1.bf16.msra.mxu0 0
    %127 = vmatprep.subr.bf16.mxu0 0
    %128 = vmatpush1.bf16.msra.mxu0 0
    %129 = vmatprep.mubr.bf16.mxu0 0
    %130 = vmatmul.mubr.bf16.gmra.mrb[0].mxu0 %v95
    %v131 = vpop.f32.mrb[0].mxu0
    %v132 = vadd.f32 0.0, %v131
    %v133 = vpop.f32.mrb[0].mxu0
    %v134 = vpop.f32.mrb[0].mxu0
    %v135 = vadd.f32 0.0, %v134
    %v136 = vpop.f32.mrb[0].mxu0
    %137 = vdwg.mxu0
    %138 = vset.pattern.permute.xlu0 1
    %139 = vperm.xlu0 %138, %v26
    %v140 = vpop.permute.xlu0 %139
    %142 = vset.pattern.permute.xlu0 1
    %143 = vperm.xlu0 %142, %v27
    %v144 = vpop.permute.xlu0 %143
    %v146 = vlaneseq
    %v147 = vshrl.u32 %v146, 7
    %v148 = vsub.s32 1, %v147
    %v149 = vrot.slane %v25, %v148
    %v150 = vadd.f32 %v140, %v149
    %v151 = vadd.f32 %v144, %v149
    %vm152 = vcmp.gt.f32.partialorder %v150, 0.0
    %vm153 = vcmp.gt.f32.partialorder %v151, 0.0
    %v154 = vmul.f32 %v150, 0.2
    %v155 = vmul.f32 %v151, 0.2
    %v156 = vsel %vm152, %v150, %v154
    %v157 = vsel %vm153, %v151, %v155
    %v158 = vsel %vm56, %v156, -1e+30
    %v159 = vsel %vm57, %v157, -1e+30
    %v160 = vsel %vm60, %v158, -inf
    %161 = vmax.xlane.f32.xlu0 %v160
    %v162 = vpop.xlane.xlu0 %161
    %v163 = vsel %vm60, %v159, -inf
    %164 = vmax.xlane.f32.xlu0 %v163
    %v165 = vpop.xlane.xlu0 %164
    %v166 = vsub.f32 %v158, %v162
    %v167 = vsub.f32 %v159, %v165
    %v168 = vmul.f32 %v166, 1.442695
    %v169 = vpow.pop %v168
    %v170 = vmul.f32 %v167, 1.442695
    %v171 = vpow.pop %v170
    %v172 = vsel %vm56, %v169, 0.0
    %v173 = vsel %vm57, %v171, 0.0
    %v174 = vsel %vm60, %v172, 0.0
    %175 = vadd.xlane.f32.xlu0 %v174
    %v176 = vpop.xlane.xlu0 %175
    %v177 = vsel %vm60, %v173, 0.0
    %178 = vadd.xlane.f32.xlu0 %v177
    %v179 = vpop.xlane.xlu0 %178
    %v180 = vmax.f32 %v176, 1e-20
    %v181 = vmax.f32 %v179, 1e-20
    %v182 = vrcp.pop %v180
    %v183 = vrcp.pop %v181
    %v184 = vmul.f32 %v172, %v182
    %v185 = vmul.f32 %v173, %v183
    %v186 = vpack.c.bf16 %v185, %v184
    %187 = vrot.lane.b32.xlu0 %v92, 120
    %v188 = vpop.permute.xlu0 %187
    %v191 = vsel %vm60, %v186, 0
    %193 = vmatprep.subr.bf16.mxu0 0
    %194 = vmatpush1.bf16.msra.mxu0 %v188
    %195 = vmatprep.subr.bf16.mxu0 0
    %196 = vmatpush1.bf16.msra.mxu0 0
    %197 = vmatprep.subr.bf16.mxu0 0
    %198 = vmatpush1.bf16.msra.mxu0 0
    %199 = vmatprep.subr.bf16.mxu0 0
    %200 = vmatpush1.bf16.msra.mxu0 0
    %201 = vmatprep.subr.bf16.mxu0 0
    %202 = vmatpush1.bf16.msra.mxu0 0
    %203 = vmatprep.subr.bf16.mxu0 0
    %204 = vmatpush1.bf16.msra.mxu0 0
    %205 = vmatprep.subr.bf16.mxu0 0
    %206 = vmatpush1.bf16.msra.mxu0 0
    %207 = vmatprep.subr.bf16.mxu0 0
    %208 = vmatpush1.bf16.msra.mxu0 0
    %209 = vmatprep.subr.bf16.mxu0 0
    %210 = vmatpush1.bf16.msra.mxu0 0
    %211 = vmatprep.subr.bf16.mxu0 0
    %212 = vmatpush1.bf16.msra.mxu0 0
    %213 = vmatprep.subr.bf16.mxu0 0
    %214 = vmatpush1.bf16.msra.mxu0 0
    %215 = vmatprep.subr.bf16.mxu0 0
    %216 = vmatpush1.bf16.msra.mxu0 0
    %217 = vmatprep.subr.bf16.mxu0 0
    %218 = vmatpush1.bf16.msra.mxu0 0
    %219 = vmatprep.subr.bf16.mxu0 0
    %220 = vmatpush1.bf16.msra.mxu0 0
    %221 = vmatprep.subr.bf16.mxu0 0
    %222 = vmatpush1.bf16.msra.mxu0 0
    %223 = vmatprep.subr.bf16.mxu0 0
    %224 = vmatpush1.bf16.msra.mxu0 0
    %225 = vmatprep.mubr.bf16.mxu0 0
    %226 = vmatmul.mubr.bf16.gmra.mrb[0].mxu0 %v191
    %v227 = vpop.f32.mrb[0].mxu0
    %v228 = vadd.f32 0.0, %v227
    %v229 = vpop.f32.mrb[0].mxu0
    %v230 = vpop.f32.mrb[0].mxu0
    %v231 = vadd.f32 0.0, %v230
    %v232 = vpop.f32.mrb[0].mxu0
    %233 = vdwg.mxu0
    %234 = vset.pattern.permute.xlu0 2
    %235 = vperm.xlu0 %234, %v26
    %v236 = vpop.permute.xlu0 %235
    %238 = vset.pattern.permute.xlu0 2
    %239 = vperm.xlu0 %238, %v27
    %v240 = vpop.permute.xlu0 %239
    %v242 = vlaneseq
    %v243 = vshrl.u32 %v242, 7
    %v244 = vsub.s32 2, %v243
    %v245 = vrot.slane %v25, %v244
    %v246 = vadd.f32 %v236, %v245
    %v247 = vadd.f32 %v240, %v245
    %vm248 = vcmp.gt.f32.partialorder %v246, 0.0
    %vm249 = vcmp.gt.f32.partialorder %v247, 0.0
    %v250 = vmul.f32 %v246, 0.2
    %v251 = vmul.f32 %v247, 0.2
    %v252 = vsel %vm248, %v246, %v250
    %v253 = vsel %vm249, %v247, %v251
    %v254 = vsel %vm56, %v252, -1e+30
    %v255 = vsel %vm57, %v253, -1e+30
    %v256 = vsel %vm60, %v254, -inf
    %257 = vmax.xlane.f32.xlu0 %v256
    %v258 = vpop.xlane.xlu0 %257
    %v259 = vsel %vm60, %v255, -inf
    %260 = vmax.xlane.f32.xlu0 %v259
    %v261 = vpop.xlane.xlu0 %260
    %v262 = vsub.f32 %v254, %v258
    %v263 = vsub.f32 %v255, %v261
    %v264 = vmul.f32 %v262, 1.442695
    %v265 = vpow.pop %v264
    %v266 = vmul.f32 %v263, 1.442695
    %v267 = vpow.pop %v266
    %v268 = vsel %vm56, %v265, 0.0
    %v269 = vsel %vm57, %v267, 0.0
    %v270 = vsel %vm60, %v268, 0.0
    %271 = vadd.xlane.f32.xlu0 %v270
    %v272 = vpop.xlane.xlu0 %271
    %v273 = vsel %vm60, %v269, 0.0
    %274 = vadd.xlane.f32.xlu0 %v273
    %v275 = vpop.xlane.xlu0 %274
    %v276 = vmax.f32 %v272, 1e-20
    %v277 = vmax.f32 %v275, 1e-20
    %v278 = vrcp.pop %v276
    %v279 = vrcp.pop %v277
    %v280 = vmul.f32 %v268, %v278
    %v281 = vmul.f32 %v269, %v279
    %v282 = vpack.c.bf16 %v281, %v280
    %283 = vrot.lane.b32.xlu0 %v92, 112
    %v284 = vpop.permute.xlu0 %283
    %v287 = vsel %vm60, %v282, 0
    %289 = vmatprep.subr.bf16.mxu0 0
    %290 = vmatpush1.bf16.msra.mxu0 %v284
    %291 = vmatprep.subr.bf16.mxu0 0
    %292 = vmatpush1.bf16.msra.mxu0 0
    %293 = vmatprep.subr.bf16.mxu0 0
    %294 = vmatpush1.bf16.msra.mxu0 0
    %295 = vmatprep.subr.bf16.mxu0 0
    %296 = vmatpush1.bf16.msra.mxu0 0
    %297 = vmatprep.subr.bf16.mxu0 0
    %298 = vmatpush1.bf16.msra.mxu0 0
    %299 = vmatprep.subr.bf16.mxu0 0
    %300 = vmatpush1.bf16.msra.mxu0 0
    %301 = vmatprep.subr.bf16.mxu0 0
    %302 = vmatpush1.bf16.msra.mxu0 0
    %303 = vmatprep.subr.bf16.mxu0 0
    %304 = vmatpush1.bf16.msra.mxu0 0
    %305 = vmatprep.subr.bf16.mxu0 0
    %306 = vmatpush1.bf16.msra.mxu0 0
    %307 = vmatprep.subr.bf16.mxu0 0
    %308 = vmatpush1.bf16.msra.mxu0 0
    %309 = vmatprep.subr.bf16.mxu0 0
    %310 = vmatpush1.bf16.msra.mxu0 0
    %311 = vmatprep.subr.bf16.mxu0 0
    %312 = vmatpush1.bf16.msra.mxu0 0
    %313 = vmatprep.subr.bf16.mxu0 0
    %314 = vmatpush1.bf16.msra.mxu0 0
    %315 = vmatprep.subr.bf16.mxu0 0
    %316 = vmatpush1.bf16.msra.mxu0 0
    %317 = vmatprep.subr.bf16.mxu0 0
    %318 = vmatpush1.bf16.msra.mxu0 0
    %319 = vmatprep.subr.bf16.mxu0 0
    %320 = vmatpush1.bf16.msra.mxu0 0
    %321 = vmatprep.mubr.bf16.mxu0 0
    %322 = vmatmul.mubr.bf16.gmra.mrb[0].mxu0 %v287
    %v323 = vpop.f32.mrb[0].mxu0
    %v324 = vadd.f32 0.0, %v323
    %v325 = vpop.f32.mrb[0].mxu0
    %v326 = vpop.f32.mrb[0].mxu0
    %v327 = vadd.f32 0.0, %v326
    %v328 = vpop.f32.mrb[0].mxu0
    %329 = vdwg.mxu0
    %330 = vset.pattern.permute.xlu0 3
    %331 = vperm.xlu0 %330, %v26
    %v332 = vpop.permute.xlu0 %331
    %334 = vset.pattern.permute.xlu0 3
    %335 = vperm.xlu0 %334, %v27
    %v336 = vpop.permute.xlu0 %335
    %v338 = vlaneseq
    %v339 = vshrl.u32 %v338, 7
    %v340 = vsub.s32 3, %v339
    %v341 = vrot.slane %v25, %v340
    %v342 = vadd.f32 %v332, %v341
    %v343 = vadd.f32 %v336, %v341
    %vm344 = vcmp.gt.f32.partialorder %v342, 0.0
    %vm345 = vcmp.gt.f32.partialorder %v343, 0.0
    %v346 = vmul.f32 %v342, 0.2
    %v347 = vmul.f32 %v343, 0.2
    %v348 = vsel %vm344, %v342, %v346
    %v349 = vsel %vm345, %v343, %v347
    %v350 = vsel %vm56, %v348, -1e+30
    %v351 = vsel %vm57, %v349, -1e+30
    %v352 = vsel %vm60, %v350, -inf
    %353 = vmax.xlane.f32.xlu0 %v352
    %v354 = vpop.xlane.xlu0 %353
    %v355 = vsel %vm60, %v351, -inf
    %356 = vmax.xlane.f32.xlu0 %v355
    %v357 = vpop.xlane.xlu0 %356
    %v358 = vsub.f32 %v350, %v354
    %v359 = vsub.f32 %v351, %v357
    %v360 = vmul.f32 %v358, 1.442695
    %v361 = vpow.pop %v360
    %v362 = vmul.f32 %v359, 1.442695
    %v363 = vpow.pop %v362
    %v364 = vsel %vm56, %v361, 0.0
    %v365 = vsel %vm57, %v363, 0.0
    %v366 = vsel %vm60, %v364, 0.0
    %367 = vadd.xlane.f32.xlu0 %v366
    %v368 = vpop.xlane.xlu0 %367
    %v369 = vsel %vm60, %v365, 0.0
    %370 = vadd.xlane.f32.xlu0 %v369
    %v371 = vpop.xlane.xlu0 %370
    %v372 = vmax.f32 %v368, 1e-20
    %v373 = vmax.f32 %v371, 1e-20
    %v374 = vrcp.pop %v372
    %v375 = vrcp.pop %v373
    %v376 = vmul.f32 %v364, %v374
    %v377 = vmul.f32 %v365, %v375
    %v378 = vpack.c.bf16 %v377, %v376
    %379 = vrot.lane.b32.xlu0 %v92, 104
    %v380 = vpop.permute.xlu0 %379
    %v383 = vsel %vm60, %v378, 0
    %385 = vmatprep.subr.bf16.mxu0 0
    %386 = vmatpush1.bf16.msra.mxu0 %v380
    %387 = vmatprep.subr.bf16.mxu0 0
    %388 = vmatpush1.bf16.msra.mxu0 0
    %389 = vmatprep.subr.bf16.mxu0 0
    %390 = vmatpush1.bf16.msra.mxu0 0
    %391 = vmatprep.subr.bf16.mxu0 0
    %392 = vmatpush1.bf16.msra.mxu0 0
    %393 = vmatprep.subr.bf16.mxu0 0
    %394 = vmatpush1.bf16.msra.mxu0 0
    %395 = vmatprep.subr.bf16.mxu0 0
    %396 = vmatpush1.bf16.msra.mxu0 0
    %397 = vmatprep.subr.bf16.mxu0 0
    %398 = vmatpush1.bf16.msra.mxu0 0
    %399 = vmatprep.subr.bf16.mxu0 0
    %400 = vmatpush1.bf16.msra.mxu0 0
    %401 = vmatprep.subr.bf16.mxu0 0
    %402 = vmatpush1.bf16.msra.mxu0 0
    %403 = vmatprep.subr.bf16.mxu0 0
    %404 = vmatpush1.bf16.msra.mxu0 0
    %405 = vmatprep.subr.bf16.mxu0 0
    %406 = vmatpush1.bf16.msra.mxu0 0
    %407 = vmatprep.subr.bf16.mxu0 0
    %408 = vmatpush1.bf16.msra.mxu0 0
    %409 = vmatprep.subr.bf16.mxu0 0
    %410 = vmatpush1.bf16.msra.mxu0 0
    %411 = vmatprep.subr.bf16.mxu0 0
    %412 = vmatpush1.bf16.msra.mxu0 0
    %413 = vmatprep.subr.bf16.mxu0 0
    %414 = vmatpush1.bf16.msra.mxu0 0
    %415 = vmatprep.subr.bf16.mxu0 0
    %416 = vmatpush1.bf16.msra.mxu0 0
    %417 = vmatprep.mubr.bf16.mxu0 0
    %418 = vmatmul.mubr.bf16.gmra.mrb[0].mxu0 %v383
    %v419 = vpop.f32.mrb[0].mxu0
    %v420 = vadd.f32 0.0, %v419
    %v421 = vpop.f32.mrb[0].mxu0
    %v422 = vpop.f32.mrb[0].mxu0
    %v423 = vadd.f32 0.0, %v422
    %v424 = vpop.f32.mrb[0].mxu0
    %425 = vdwg.mxu0
    %428 = vrot.lane.b32.xlu0 %v228, 8
    %v429 = vpop.permute.xlu0 %428
    %430 = vrot.lane.b32.xlu0 %v231, 8
    %v431 = vpop.permute.xlu0 %430
    %436 = vrot.lane.b32.xlu0 %v324, 16
    %v437 = vpop.permute.xlu0 %436
    %438 = vrot.lane.b32.xlu0 %v327, 16
    %v439 = vpop.permute.xlu0 %438
    %444 = vrot.lane.b32.xlu0 %v420, 24
    %v445 = vpop.permute.xlu0 %444
    %446 = vrot.lane.b32.xlu0 %v423, 24
    %v447 = vpop.permute.xlu0 %446
    %vm450 = vcmask 64512
    %v451 = vsel %vm450, %v132, %v429
    %v452 = vsel %vm450, %v135, %v431
    %v453 = vsel %vm60, %v451, %v437
    %v454 = vsel %vm60, %v452, %v439
    %vm455 = vcmask 195584
    %v456 = vsel %vm455, %v453, %v445
    %v457 = vsel %vm455, %v454, %v447
    %vm458 = vcmask 261120
    %459 = vst.msk [vmem:[#allocation2] sm:$0xff] %vm458, %v456
    %460 = vst.msk [vmem:[#allocation2 + $0x8] sm:$0xff] %vm458, %v457
    // Predicated region
    $region18: #{tpu_custom_call.1} parent=1 // pred_check
      _
    $region19: #{tpu_custom_call.1} parent=1 // pred_check_branch
      %462 = sbr.rel (0) target = $region21
    $region20: #{tpu_custom_call.1} parent=1 // pred_region
      %s464 = ssub.s32 256, 256
      %465 = vsyncadd [#allocation3], %s464
      %s466 = sshll.u32 [#allocation2], 4
      %s467 = int_to_ptr.vmem [resolvable:$true] %s466
      %472 = dma.vmem_to_hbm [thread:$0]  %s467, 256, %s4, [#allocation3], 128, 128, 8
    $region21: #{tpu_custom_call.1} parent=1 // pred_fallthru
      _
    // Predicated region
    $region22: #{tpu_custom_call.1} parent=1 // pred_check
      _
    $region23: #{tpu_custom_call.1} parent=1 // pred_check_branch
      %474 = sbr.rel (0) target = $region25
    $region24: #{tpu_custom_call.1} parent=1 // pred_region
      %475 = dma.done [#allocation3], 256
    $region25: #{tpu_custom_call.1} parent=1 // pred_fallthru
      _
    %476 = vsyncpa [#allocation3], 1

</llo_original>
